<compile_context>
chip_gen: v5e
topology: v5e:2x2
jax: 0.10.0
libtpu: 0.0.40
codegen_flags: <defaults>
</compile_context>

<pallas_src>
import jax
import jax.numpy as jnp
from jax.experimental import pallas as pl
from jax.experimental.pallas import tpu as pltpu


def _lstm_cell_kernel(x_ref, h_ref, wx_ref, wh_ref, b_ref, ht_ref, ct_ref):
    # x_ref : [TB, I]          h_ref : [TB, Hp]
    # wx_ref: [4, I, TH]       wh_ref: [4, Hp, TH]     b_ref: [4, TH]
    # ht_ref, ct_ref: [TB, TH]
    x = x_ref[...]
    h = h_ref[...]
    bias = b_ref[...].astype(jnp.float32)          # tiny: [4, TH]

    def gate_pre(g):
        # Two MXU dots, f32 accumulation. Operands keep their input dtype so a
        # bf16 caller gets the bf16 MXU path for free.
        z = jnp.dot(x, wx_ref[g], preferred_element_type=jnp.float32)
        z = z + jnp.dot(h, wh_ref[g], preferred_element_type=jnp.float32)
        return z + bias[g]

    # Gate order (f, i, c, o) matching the reference module. Computed in an
    # order that keeps at most ~2 [TB, TH] f32 temporaries live at once.
    s = jax.nn.sigmoid(gate_pre(0)) + jax.nn.sigmoid(gate_pre(1))   # ft + it
    ct = s * jnp.tanh(gate_pre(2))                                  # (ft+it)*c~t
    ct_ref[...] = ct.astype(ct_ref.dtype)
    ht = jax.nn.sigmoid(gate_pre(3)) * jnp.tanh(ct)                 # ot*tanh(ct)
    ht_ref[...] = ht.astype(ht_ref.dtype)


def _round_up(x, m):
    return ((x + m - 1) // m) * m


def _largest_divisor_tile(dim, candidates):
    for c in candidates:
        if dim >= c and dim % c == 0:
            return c
    return dim


def my_lstm_cell(xt, ht_pro, ct_pro, wx, wh, b):
    """xt:[B,I], ht_pro:[B,H], ct_pro:[B,H] (unused by the reference forward,
    kept for API parity), wx:[4,I,H], wh:[4,H,H], b:[4,H] -> (ht:[B,H], ct:[B,H]).

    Pass bf16 xt/ht_pro/wx/wh/b to halve HBM traffic; gate math stays f32."""
    del ct_pro  # the reference forward never reads it
    B, I = xt.shape
    H = ht_pro.shape[1]
    dtype = xt.dtype
    itemsize = jnp.dtype(dtype).itemsize

    # ---- Pad to lane/sublane-friendly shapes (lane-dense outputs) ----------
    Hp = _round_up(max(H, 128), 128)
    Bp = _round_up(max(B, 8), 8)
    if Hp != H:
        ht_pro = jnp.pad(ht_pro, ((0, 0), (0, Hp - H)))
        wx = jnp.pad(wx, ((0, 0), (0, 0), (0, Hp - H)))
        wh = jnp.pad(wh, ((0, 0), (0, Hp - H), (0, Hp - H)))
        b = jnp.pad(b, ((0, 0), (0, Hp - H)))
    if Bp != B:
        xt = jnp.pad(xt, ((0, Bp - B), (0, 0)))
        ht_pro = jnp.pad(ht_pro, ((0, Bp - B), (0, 0)))

    # ---- Generation-aware VMEM budget (v5e/v6e: 128 MiB, v7x: 64 MiB) ------
    try:
        vmem_cap = int(pltpu.get_tpu_info().vmem_capacity_bytes)
    except Exception:  # pragma: no cover - conservative fallback
        vmem_cap = 64 << 20
    budget = int(vmem_cap * 0.75)

    # Batch tile: multiple of 8 sublanes; large enough to amortize per-step cost.
    TB = _largest_divisor_tile(Bp, (256, 128, 64, 32, 16, 8))

    def _block_bytes(th):
        return ((TB * I + TB * Hp)            # x, h tiles
                + 4 * (I + Hp) * th           # Wx, Wh tiles (the dominant term)
                + 4 * th                      # bias tile
                + 2 * TB * th) * itemsize     # ht, ct tiles

    def _fits(th):
        live_f32 = 3 * TB * th * 4            # in-kernel f32 temporaries
        return 2 * _block_bytes(th) + live_f32 <= budget   # double-buffered

    # Hidden tile: prefer full Hp resident, else the largest 128-multiple that
    # fits the double-buffered VMEM budget (>=256 whenever possible).
    th_candidates = [Hp] + [c for c in (1024, 512, 256, 128)
                            if c < Hp and Hp % c == 0]
    TH = th_candidates[-1]
    for cand in th_candidates:
        if _fits(cand):
            TH = cand
            break

    vmem_limit = int(min(max(2 * _block_bytes(TH) + 3 * TB * TH * 4 + (4 << 20),
                             16 << 20),
                         int(vmem_cap * 0.92)))

    # Grid: hidden axis OUTER (slow) so weight blocks stay resident across the
    # inner batch sweep; batch axis INNER (fast).
    grid = (Hp // TH, Bp // TB)

    out_shapes = (
        jax.ShapeDtypeStruct((Bp, Hp), dtype),
        jax.ShapeDtypeStruct((Bp, Hp), dtype),
    )

    ht_p, ct_p = pl.pallas_call(
        _lstm_cell_kernel,
        out_shape=out_shapes,
        grid_spec=pltpu.PrefetchScalarGridSpec(
            num_scalar_prefetch=0,
            grid=grid,
            in_specs=[
                # Activations depend only on the inner (batch) grid index.
                pl.BlockSpec((TB, I), lambda hi, bi: (bi, 0)),        # xt
                pl.BlockSpec((TB, Hp), lambda hi, bi: (bi, 0)),       # ht_pro
                # Weights depend only on the outer (hidden) grid index ->
                # resident across the batch sweep, streamed from HBM once.
                pl.BlockSpec((4, I, TH), lambda hi, bi: (0, 0, hi)),  # Wx
                pl.BlockSpec((4, Hp, TH), lambda hi, bi: (0, 0, hi)), # Wh
                pl.BlockSpec((4, TH), lambda hi, bi: (0, hi)),        # b
            ],
            out_specs=[
                pl.BlockSpec((TB, TH), lambda hi, bi: (bi, hi)),      # ht
                pl.BlockSpec((TB, TH), lambda hi, bi: (bi, hi)),      # ct
            ],
        ),
        compiler_params=pltpu.CompilerParams(
            # Hidden axis "parallel": v7x megacore shards disjoint weight
            # columns across the 2 TCs (no duplicated weight DMA). Batch axis
            # "arbitrary" (it carries the weight-residency reuse).
            dimension_semantics=("parallel", "arbitrary"),
            vmem_limit_bytes=vmem_limit,
        ),
    )(xt, ht_pro, wx, wh, b)

    if Bp != B or Hp != H:
        return ht_p[:B, :H], ct_p[:B, :H]
    return ht_p, ct_p


def init_params(key, input_size, hidden_size, dtype=jnp.float32):
    """PyTorch-style nn.Linear init: U(-1/sqrt(fan_in), 1/sqrt(fan_in)) with
    fan_in = input_size + hidden_size. Stored per gate (order f, i, c, o) as
    wx:[4, I, H], wh:[4, H, H], b:[4, H]."""
    D = input_size + hidden_size
    bound = 1.0 / float(D) ** 0.5
    keys = jax.random.split(key, 8)
    wx_list, wh_list, b_list = [], [], []
    for g in range(4):
        w = jax.random.uniform(keys[2 * g], (D, hidden_size),
                               minval=-bound, maxval=bound, dtype=dtype)
        bg = jax.random.uniform(keys[2 * g + 1], (hidden_size,),
                                minval=-bound, maxval=bound, dtype=dtype)
        wx_list.append(w[:input_size])   # [I, H]
        wh_list.append(w[input_size:])   # [H, H]
        b_list.append(bg)                # [H]
    wx = jnp.stack(wx_list, axis=0)      # [4, I, H]
    wh = jnp.stack(wh_list, axis=0)      # [4, H, H]
    b = jnp.stack(b_list, axis=0)        # [4, H]
    return wx, wh, b


def reference_forward(xt, ht_pro, ct_pro, wx, wh, b):
    """Pure-JAX reference mirroring the PyTorch module (eval mode)."""
    del ct_pro

    def lin(g):
        return xt @ wx[g] + ht_pro @ wh[g] + b[g]

    ft = jax.nn.sigmoid(lin(0))
    it = jax.nn.sigmoid(lin(1))
    c_t = jnp.tanh(lin(2))
    ot = jax.nn.sigmoid(lin(3))
    ct = ft * c_t + it * c_t
    ht = ot * jnp.tanh(ct)
    return ht, ct


if __name__ == "__main__":
    B, input_size, hidden_size = 8, 32, 32

    key = jax.random.PRNGKey(0)
    k_x, k_h, k_c, k_p = jax.random.split(key, 4)
    xt = jax.random.normal(k_x, (B, input_size), dtype=jnp.float32)
    ht_pro = jax.random.normal(k_h, (B, hidden_size), dtype=jnp.float32)
    ct_pro = jax.random.normal(k_c, (B, hidden_size), dtype=jnp.float32)

    wx, wh, b = init_params(k_p, input_size, hidden_size)

    ht, ct = jax.jit(my_lstm_cell)(xt, ht_pro, ct_pro, wx, wh, b)
    jax.block_until_ready((ht, ct))

    ht_ref, ct_ref = reference_forward(xt, ht_pro, ct_pro, wx, wh, b)
    assert ht.shape == ht_ref.shape and ct.shape == ct_ref.shape
    assert jnp.allclose(ht, ht_ref, atol=1e-5, rtol=1e-5)
    assert jnp.allclose(ct, ct_ref, atol=1e-5, rtol=1e-5)

    print("KERNEL_OK")
</pallas_src>

<mosaic_0001>
module attributes {stable_mosaic.version = 11 : i64} {
  func.func @_lstm_cell_kernel(%arg0: i32, %arg1: i32, %arg2: memref<8x32xf32, #tpu.memory_space<vmem>>, %arg3: memref<8x128xf32, #tpu.memory_space<vmem>>, %arg4: memref<4x32x128xf32, #tpu.memory_space<vmem>>, %arg5: memref<4x128x128xf32, #tpu.memory_space<vmem>>, %arg6: memref<4x128xf32, #tpu.memory_space<vmem>>, %arg7: memref<8x128xf32, #tpu.memory_space<vmem>>, %arg8: memref<8x128xf32, #tpu.memory_space<vmem>>) attributes {dimension_semantics = [#tpu.dimension_semantics<parallel>, #tpu.dimension_semantics<arbitrary>], iteration_bounds = array<i64: 1, 1>, scalar_prefetch = 0 : i64, scratch_operands = 0 : i64, tpu.core_type = #tpu.core_type<tc>, window_params = [{transform_indices = @transform_0, window_bounds = array<i64: 8, 32>}, {transform_indices = @transform_1, window_bounds = array<i64: 8, 128>}, {transform_indices = @transform_2, window_bounds = array<i64: 4, 32, 128>}, {transform_indices = @transform_3, window_bounds = array<i64: 4, 128, 128>}, {transform_indices = @transform_4, window_bounds = array<i64: 4, 128>}, {transform_indices = @transform_5, window_bounds = array<i64: 8, 128>}, {transform_indices = @transform_6, window_bounds = array<i64: 8, 128>}]} {
    %c0 = arith.constant 0 : index
    %c0_0 = arith.constant 0 : index
    %0 = vector.load %arg2[%c0, %c0_0] : memref<8x32xf32, #tpu.memory_space<vmem>>, vector<8x32xf32>
    %c0_1 = arith.constant 0 : index
    %c0_2 = arith.constant 0 : index
    %1 = vector.load %arg3[%c0_1, %c0_2] : memref<8x128xf32, #tpu.memory_space<vmem>>, vector<8x128xf32>
    %c0_3 = arith.constant 0 : index
    %c0_4 = arith.constant 0 : index
    %2 = vector.load %arg6[%c0_3, %c0_4] : memref<4x128xf32, #tpu.memory_space<vmem>>, vector<4x128xf32>
    %c0_5 = arith.constant 0 : index
    %c0_6 = arith.constant 0 : index
    %c0_7 = arith.constant 0 : index
    %3 = vector.load %arg4[%c0_5, %c0_6, %c0_7] : memref<4x32x128xf32, #tpu.memory_space<vmem>>, vector<1x32x128xf32>
    %4 = vector.shape_cast %3 : vector<1x32x128xf32> to vector<32x128xf32>
    %cst = arith.constant dense<0.000000e+00> : vector<8x128xf32>
    %5 = tpu.matmul %0, %4, %cst {dimension_numbers = #tpu.dot_dimension_numbers<[1], [0], [0], [1], [0, 0, 1, 1], [], []>} : vector<8x32xf32>, vector<32x128xf32>, vector<8x128xf32> -> vector<8x128xf32>
    %c0_8 = arith.constant 0 : index
    %c0_9 = arith.constant 0 : index
    %c0_10 = arith.constant 0 : index
    %6 = vector.load %arg5[%c0_8, %c0_9, %c0_10] : memref<4x128x128xf32, #tpu.memory_space<vmem>>, vector<1x128x128xf32>
    %7 = vector.shape_cast %6 : vector<1x128x128xf32> to vector<128x128xf32>
    %cst_11 = arith.constant dense<0.000000e+00> : vector<8x128xf32>
    %8 = tpu.matmul %1, %7, %cst_11 {dimension_numbers = #tpu.dot_dimension_numbers<[1], [0], [0], [1], [0, 0, 1, 1], [], []>} : vector<8x128xf32>, vector<128x128xf32>, vector<8x128xf32> -> vector<8x128xf32>
    %9 = arith.addf %5, %8 : vector<8x128xf32>
    %10 = vector.extract_strided_slice %2 {offsets = [0, 0], sizes = [1, 128], strides = [1, 1]} : vector<4x128xf32> to vector<1x128xf32>
    %11 = vector.shape_cast %10 : vector<1x128xf32> to vector<128xf32>
    %12 = vector.shape_cast %11 : vector<128xf32> to vector<1x128xf32>
    %13 = vector.broadcast %12 : vector<1x128xf32> to vector<8x128xf32>
    %14 = arith.addf %9, %13 : vector<8x128xf32>
    %15 = arith.negf %14 : vector<8x128xf32>
    %16 = math.exp %15 : vector<8x128xf32>
    %cst_12 = arith.constant 1.000000e+00 : f32
    %17 = vector.broadcast %cst_12 : f32 to vector<8x128xf32>
    %18 = arith.addf %17, %16 : vector<8x128xf32>
    %19 = arith.divf %17, %18 : vector<8x128xf32>
    %c1 = arith.constant 1 : index
    %c0_13 = arith.constant 0 : index
    %c0_14 = arith.constant 0 : index
    %20 = vector.load %arg4[%c1, %c0_13, %c0_14] : memref<4x32x128xf32, #tpu.memory_space<vmem>>, vector<1x32x128xf32>
    %21 = vector.shape_cast %20 : vector<1x32x128xf32> to vector<32x128xf32>
    %cst_15 = arith.constant dense<0.000000e+00> : vector<8x128xf32>
    %22 = tpu.matmul %0, %21, %cst_15 {dimension_numbers = #tpu.dot_dimension_numbers<[1], [0], [0], [1], [0, 0, 1, 1], [], []>} : vector<8x32xf32>, vector<32x128xf32>, vector<8x128xf32> -> vector<8x128xf32>
    %c1_16 = arith.constant 1 : index
    %c0_17 = arith.constant 0 : index
    %c0_18 = arith.constant 0 : index
    %23 = vector.load %arg5[%c1_16, %c0_17, %c0_18] : memref<4x128x128xf32, #tpu.memory_space<vmem>>, vector<1x128x128xf32>
    %24 = vector.shape_cast %23 : vector<1x128x128xf32> to vector<128x128xf32>
    %cst_19 = arith.constant dense<0.000000e+00> : vector<8x128xf32>
    %25 = tpu.matmul %1, %24, %cst_19 {dimension_numbers = #tpu.dot_dimension_numbers<[1], [0], [0], [1], [0, 0, 1, 1], [], []>} : vector<8x128xf32>, vector<128x128xf32>, vector<8x128xf32> -> vector<8x128xf32>
    %26 = arith.addf %22, %25 : vector<8x128xf32>
    %27 = vector.extract_strided_slice %2 {offsets = [1, 0], sizes = [1, 128], strides = [1, 1]} : vector<4x128xf32> to vector<1x128xf32>
    %28 = vector.shape_cast %27 : vector<1x128xf32> to vector<128xf32>
    %29 = vector.shape_cast %28 : vector<128xf32> to vector<1x128xf32>
    %30 = vector.broadcast %29 : vector<1x128xf32> to vector<8x128xf32>
    %31 = arith.addf %26, %30 : vector<8x128xf32>
    %32 = arith.negf %31 : vector<8x128xf32>
    %33 = math.exp %32 : vector<8x128xf32>
    %cst_20 = arith.constant 1.000000e+00 : f32
    %34 = vector.broadcast %cst_20 : f32 to vector<8x128xf32>
    %35 = arith.addf %34, %33 : vector<8x128xf32>
    %36 = arith.divf %34, %35 : vector<8x128xf32>
    %37 = arith.addf %19, %36 : vector<8x128xf32>
    %c2 = arith.constant 2 : index
    %c0_21 = arith.constant 0 : index
    %c0_22 = arith.constant 0 : index
    %38 = vector.load %arg4[%c2, %c0_21, %c0_22] : memref<4x32x128xf32, #tpu.memory_space<vmem>>, vector<1x32x128xf32>
    %39 = vector.shape_cast %38 : vector<1x32x128xf32> to vector<32x128xf32>
    %cst_23 = arith.constant dense<0.000000e+00> : vector<8x128xf32>
    %40 = tpu.matmul %0, %39, %cst_23 {dimension_numbers = #tpu.dot_dimension_numbers<[1], [0], [0], [1], [0, 0, 1, 1], [], []>} : vector<8x32xf32>, vector<32x128xf32>, vector<8x128xf32> -> vector<8x128xf32>
    %c2_24 = arith.constant 2 : index
    %c0_25 = arith.constant 0 : index
    %c0_26 = arith.constant 0 : index
    %41 = vector.load %arg5[%c2_24, %c0_25, %c0_26] : memref<4x128x128xf32, #tpu.memory_space<vmem>>, vector<1x128x128xf32>
    %42 = vector.shape_cast %41 : vector<1x128x128xf32> to vector<128x128xf32>
    %cst_27 = arith.constant dense<0.000000e+00> : vector<8x128xf32>
    %43 = tpu.matmul %1, %42, %cst_27 {dimension_numbers = #tpu.dot_dimension_numbers<[1], [0], [0], [1], [0, 0, 1, 1], [], []>} : vector<8x128xf32>, vector<128x128xf32>, vector<8x128xf32> -> vector<8x128xf32>
    %44 = arith.addf %40, %43 : vector<8x128xf32>
    %45 = vector.extract_strided_slice %2 {offsets = [2, 0], sizes = [1, 128], strides = [1, 1]} : vector<4x128xf32> to vector<1x128xf32>
    %46 = vector.shape_cast %45 : vector<1x128xf32> to vector<128xf32>
    %47 = vector.shape_cast %46 : vector<128xf32> to vector<1x128xf32>
    %48 = vector.broadcast %47 : vector<1x128xf32> to vector<8x128xf32>
    %49 = arith.addf %44, %48 : vector<8x128xf32>
    %50 = math.tanh %49 : vector<8x128xf32>
    %51 = arith.mulf %37, %50 : vector<8x128xf32>
    %c0_28 = arith.constant 0 : index
    %c0_29 = arith.constant 0 : index
    %52 = vector.load %arg8[%c0_28, %c0_29] : memref<8x128xf32, #tpu.memory_space<vmem>>, vector<8x128xf32>
    tpu.vector_store %arg8[%c0_28, %c0_29], %51 {strides = array<i32>} : memref<8x128xf32, #tpu.memory_space<vmem>>, vector<8x128xf32>,
    %c3 = arith.constant 3 : index
    %c0_30 = arith.constant 0 : index
    %c0_31 = arith.constant 0 : index
    %53 = vector.load %arg4[%c3, %c0_30, %c0_31] : memref<4x32x128xf32, #tpu.memory_space<vmem>>, vector<1x32x128xf32>
    %54 = vector.shape_cast %53 : vector<1x32x128xf32> to vector<32x128xf32>
    %cst_32 = arith.constant dense<0.000000e+00> : vector<8x128xf32>
    %55 = tpu.matmul %0, %54, %cst_32 {dimension_numbers = #tpu.dot_dimension_numbers<[1], [0], [0], [1], [0, 0, 1, 1], [], []>} : vector<8x32xf32>, vector<32x128xf32>, vector<8x128xf32> -> vector<8x128xf32>
    %c3_33 = arith.constant 3 : index
    %c0_34 = arith.constant 0 : index
    %c0_35 = arith.constant 0 : index
    %56 = vector.load %arg5[%c3_33, %c0_34, %c0_35] : memref<4x128x128xf32, #tpu.memory_space<vmem>>, vector<1x128x128xf32>
    %57 = vector.shape_cast %56 : vector<1x128x128xf32> to vector<128x128xf32>
    %cst_36 = arith.constant dense<0.000000e+00> : vector<8x128xf32>
    %58 = tpu.matmul %1, %57, %cst_36 {dimension_numbers = #tpu.dot_dimension_numbers<[1], [0], [0], [1], [0, 0, 1, 1], [], []>} : vector<8x128xf32>, vector<128x128xf32>, vector<8x128xf32> -> vector<8x128xf32>
    %59 = arith.addf %55, %58 : vector<8x128xf32>
    %60 = vector.extract_strided_slice %2 {offsets = [3, 0], sizes = [1, 128], strides = [1, 1]} : vector<4x128xf32> to vector<1x128xf32>
    %61 = vector.shape_cast %60 : vector<1x128xf32> to vector<128xf32>
    %62 = vector.shape_cast %61 : vector<128xf32> to vector<1x128xf32>
    %63 = vector.broadcast %62 : vector<1x128xf32> to vector<8x128xf32>
    %64 = arith.addf %59, %63 : vector<8x128xf32>
    %65 = arith.negf %64 : vector<8x128xf32>
    %66 = math.exp %65 : vector<8x128xf32>
    %cst_37 = arith.constant 1.000000e+00 : f32
    %67 = vector.broadcast %cst_37 : f32 to vector<8x128xf32>
    %68 = arith.addf %67, %66 : vector<8x128xf32>
    %69 = arith.divf %67, %68 : vector<8x128xf32>
    %70 = math.tanh %51 : vector<8x128xf32>
    %71 = arith.mulf %69, %70 : vector<8x128xf32>
    %c0_38 = arith.constant 0 : index
    %c0_39 = arith.constant 0 : index
    %72 = vector.load %arg7[%c0_38, %c0_39] : memref<8x128xf32, #tpu.memory_space<vmem>>, vector<8x128xf32>
    tpu.vector_store %arg7[%c0_38, %c0_39], %71 {strides = array<i32>} : memref<8x128xf32, #tpu.memory_space<vmem>>, vector<8x128xf32>,
    return
  }
  func.func @transform_0(%arg0: i32, %arg1: i32) -> (i32, i32) {
    %c0_i32 = arith.constant 0 : i32
    %c0_i32_0 = arith.constant 0 : i32
    return %arg1, %c0_i32 : i32, i32
  }
  func.func @transform_1(%arg0: i32, %arg1: i32) -> (i32, i32) {
    %c0_i32 = arith.constant 0 : i32
    %c0_i32_0 = arith.constant 0 : i32
    return %arg1, %c0_i32 : i32, i32
  }
  func.func @transform_2(%arg0: i32, %arg1: i32) -> (i32, i32, i32) {
    %c0_i32 = arith.constant 0 : i32
    %c0_i32_0 = arith.constant 0 : i32
    %c0_i32_1 = arith.constant 0 : i32
    return %c0_i32, %c0_i32_0, %arg0 : i32, i32, i32
  }
  func.func @transform_3(%arg0: i32, %arg1: i32) -> (i32, i32, i32) {
    %c0_i32 = arith.constant 0 : i32
    %c0_i32_0 = arith.constant 0 : i32
    %c0_i32_1 = arith.constant 0 : i32
    return %c0_i32, %c0_i32_0, %arg0 : i32, i32, i32
  }
  func.func @transform_4(%arg0: i32, %arg1: i32) -> (i32, i32) {
    %c0_i32 = arith.constant 0 : i32
    %c0_i32_0 = arith.constant 0 : i32
    return %c0_i32, %arg0 : i32, i32
  }
  func.func @transform_5(%arg0: i32, %arg1: i32) -> (i32, i32) {
    %c0_i32 = arith.constant 0 : i32
    return %arg1, %arg0 : i32, i32
  }
  func.func @transform_6(%arg0: i32, %arg1: i32) -> (i32, i32) {
    %c0_i32 = arith.constant 0 : i32
    return %arg1, %arg0 : i32, i32
  }
}

</mosaic_0001>

<llo_original>
// kernel: my_lstm_cell.1
$region0: #{my_lstm_cell.1}
  #allocation0 [shape = 'u32[]', space=smem, size = 0x4, offset = 0x4, fixed_abs, tag = 'smem constant byte address 0x4 - core index']
  #allocation1 [shape = 'u32[72,128]{1,0:T(1,128)}', space=vmem, size = 0x9000, scoped, tag = 'internal scratch']
  %s0 = inlined_call_operand.vmem [shape: f32[8,32], index: 0, kind: input, shape index: {}]
  %s1 = inlined_call_operand.vmem [shape: f32[8,128], index: 1, kind: input, shape index: {}]
  %s2 = inlined_call_operand.vmem [shape: f32[4,32,128], index: 2, kind: input, shape index: {}]
  %s3 = inlined_call_operand.vmem [shape: f32[4,128,128], index: 3, kind: input, shape index: {}]
  %s4 = inlined_call_operand.vmem [shape: f32[4,128], index: 4, kind: input, shape index: {}]
  %s5 = inlined_call_operand.hbm [shape: f32[8,128], index: 5, kind: output, shape index: {0}]
  %s6 = inlined_call_operand.hbm [shape: f32[8,128], index: 6, kind: output, shape index: {1}]
  %7 = xla_tuple %s5, %s6
  %s8 = sld [smem:[#allocation0]]
  $region38: #{my_lstm_cell.1} parent=0
    _
  %s10 = ssub.s32 1, %s8
  %s11 = scalar_select 0, %s10, %s8
  $region1: #{my_lstm_cell.1} parent=0
    #allocation2 [shape = 'u8[4096]{0}', space=vmem, size = 0x1000, scoped, tag = 'output window, operand 0, single buffered']
    #allocation3 [shape = 's32[1]{0}', space=sflag, size = 0x4, scoped, tag = 'scoped memory for my_lstm_cell.1']
    #allocation4 [shape = 'u8[4096]{0}', space=vmem, size = 0x1000, scoped, tag = 'output window, operand 1, single buffered']
    #allocation5 [shape = 's32[1]{0}', space=sflag, size = 0x4, scoped, tag = 'scoped memory for my_lstm_cell.1']
    %12 = vsyncpa [#allocation3], 0
    %13 = vsyncpa [#allocation5], 0
    // Predicated region
    $region2: #{my_lstm_cell.1} parent=1 // pred_check
      _
    $region3: #{my_lstm_cell.1} parent=1 // pred_check_branch
      %15 = sbr.rel (0) target = $region5
    $region4: #{my_lstm_cell.1} parent=1 // pred_region
      _
    $region5: #{my_lstm_cell.1} parent=1 // pred_fallthru
      _
    // Predicated region
    $region6: #{my_lstm_cell.1} parent=1 // pred_check
      _
    $region7: #{my_lstm_cell.1} parent=1 // pred_check_branch
      %17 = sbr.rel (0) target = $region9
    $region8: #{my_lstm_cell.1} parent=1 // pred_region
      _
    $region9: #{my_lstm_cell.1} parent=1 // pred_fallthru
      _
    // Predicated region
    $region10: #{my_lstm_cell.1} parent=1 // pred_check
      _
    $region11: #{my_lstm_cell.1} parent=1 // pred_check_branch
      %19 = sbr.rel (0) target = $region13
    $region12: #{my_lstm_cell.1} parent=1 // pred_region
      _
    $region13: #{my_lstm_cell.1} parent=1 // pred_fallthru
      _
    // Predicated region
    $region14: #{my_lstm_cell.1} parent=1 // pred_check
      _
    $region15: #{my_lstm_cell.1} parent=1 // pred_check_branch
      %21 = sbr.rel (0) target = $region17
    $region16: #{my_lstm_cell.1} parent=1 // pred_region
      _
    $region17: #{my_lstm_cell.1} parent=1 // pred_fallthru
      _
    // Predicated region
    $region18: #{my_lstm_cell.1} parent=1 // pred_check
      _
    $region19: #{my_lstm_cell.1} parent=1 // pred_check_branch
      %23 = sbr.rel (0) target = $region21
    $region20: #{my_lstm_cell.1} parent=1 // pred_region
      _
    $region21: #{my_lstm_cell.1} parent=1 // pred_fallthru
      _
    %v24 = vld [vmem:[%s0] sm:$0xff]
    %v25 = vld [vmem:[%s1] sm:$0xff]
    %v26 = vld [vmem:[%s4] sm:$0xf]
    %v27 = vld [vmem:[%s2] sm:$0xff]
    %v28 = vld [vmem:[%s2 + $0x8] sm:$0xff]
    %v29 = vld [vmem:[%s2 + $0x10] sm:$0xff]
    %v30 = vld [vmem:[%s2 + $0x18] sm:$0xff]
    %v31 = vld [vmem:[%s3] sm:$0xff]
    %v32 = vld [vmem:[%s3 + $0x8] sm:$0xff]
    %v33 = vld [vmem:[%s3 + $0x10] sm:$0xff]
    %v34 = vld [vmem:[%s3 + $0x18] sm:$0xff]
    %v35 = vld [vmem:[%s3 + $0x20] sm:$0xff]
    %v36 = vld [vmem:[%s3 + $0x28] sm:$0xff]
    %v37 = vld [vmem:[%s3 + $0x30] sm:$0xff]
    %v38 = vld [vmem:[%s3 + $0x38] sm:$0xff]
    %v39 = vld [vmem:[%s3 + $0x40] sm:$0xff]
    %v40 = vld [vmem:[%s3 + $0x48] sm:$0xff]
    %v41 = vld [vmem:[%s3 + $0x50] sm:$0xff]
    %v42 = vld [vmem:[%s3 + $0x58] sm:$0xff]
    %v43 = vld [vmem:[%s3 + $0x60] sm:$0xff]
    %v44 = vld [vmem:[%s3 + $0x68] sm:$0xff]
    %v45 = vld [vmem:[%s3 + $0x70] sm:$0xff]
    %v46 = vld [vmem:[%s3 + $0x78] sm:$0xff]
    %47 = vmatpush.msra.mxu0 %v46
    %48 = vmatpush.msra.mxu0 %v45
    %49 = vmatpush.msra.mxu0 %v44
    %50 = vmatpush.msra.mxu0 %v43
    %51 = vmatpush.msra.mxu0 %v42
    %52 = vmatpush.msra.mxu0 %v41
    %53 = vmatpush.msra.mxu0 %v40
    %54 = vmatpush.msra.mxu0 %v39
    %55 = vmatpush.msra.mxu0 %v38
    %56 = vmatpush.msra.mxu0 %v37
    %57 = vmatpush.msra.mxu0 %v36
    %58 = vmatpush.msra.mxu0 %v35
    %59 = vmatpush.msra.mxu0 %v34
    %60 = vmatpush.msra.mxu0 %v33
    %61 = vmatpush.msra.mxu0 %v32
    %62 = vmatpush.msra.mxu0 %v31
    %63 = vmatmul.f32.gmra.mxu0 %v25
    %v64 = vpop.f32.mrf.mxu0
    %v65 = vadd.f32 0.0, %v64
    %66 = vdwg.mxu0
    %vm67 = vcmask 261120
    %v69 = vsel %vm67, %v24, 0
    %71 = vmatpush.msra.mxu0 0.0
    %72 = vmatpush.msra.mxu0 0.0
    %73 = vmatpush.msra.mxu0 0.0
    %74 = vmatpush.msra.mxu0 0.0
    %75 = vmatpush.msra.mxu0 0.0
    %76 = vmatpush.msra.mxu0 0.0
    %77 = vmatpush.msra.mxu0 0.0
    %78 = vmatpush.msra.mxu0 0.0
    %79 = vmatpush.msra.mxu0 0.0
    %80 = vmatpush.msra.mxu0 0.0
    %81 = vmatpush.msra.mxu0 0.0
    %82 = vmatpush.msra.mxu0 0.0
    %83 = vmatpush.msra.mxu0 %v30
    %84 = vmatpush.msra.mxu0 %v29
    %85 = vmatpush.msra.mxu0 %v28
    %86 = vmatpush.msra.mxu0 %v27
    %87 = vmatmul.f32.gmra.mxu0 %v69
    %v88 = vpop.f32.mrf.mxu0
    %v89 = vadd.f32 %v65, %v88
    %90 = vdwg.mxu0
    %v91 = vperm.slane %v26, 0
    %v92 = vadd.f32 %v89, %v91
    %v93 = vxor.u32 %v92, 2147483648
    %v94 = vmul.f32 %v93, 1.442695
    %v95 = vpow.pop %v94
    %v96 = vadd.f32 %v95, 1.0
    %v97 = vrcp.pop %v96
    %v98 = vmul.f32 %v96, %v97
    %v99 = vsub.f32 1.0, %v98
    %v100 = vmul.f32 %v97, %v99
    %v101 = vadd.f32 %v97, %v100
    %vm102 = vweird.f32 %v96
    %vm103 = vweird.f32 %v97
    %vm104 = vmor %vm102, %vm103
    %v105 = vsel %vm104, %v97, %v101
    %v106 = vand.u32 2147483647, %v96
    %vm107 = vcmp.eq.f32.partialorder %v106, 8.507059e+37
    %v108 = vand.u32 %v96, 2147483648
    %v109 = vor.u32 1.1754944e-38, %v108
    %v110 = vsel %vm107, %v109, %v105
    %v111 = vmul.f32 1.0, %v110
    %s112 = scalar_lea.vmem %s2, 32
    %v113 = vld [vmem:[%s112] sm:$0xff]
    %v114 = vld [vmem:[%s112 + $0x8] sm:$0xff]
    %v115 = vld [vmem:[%s112 + $0x10] sm:$0xff]
    %v116 = vld [vmem:[%s112 + $0x18] sm:$0xff]
    %s117 = scalar_lea.vmem %s3, 128
    %v118 = vld [vmem:[%s117] sm:$0xff]
    %v119 = vld [vmem:[%s117 + $0x8] sm:$0xff]
    %v120 = vld [vmem:[%s117 + $0x10] sm:$0xff]
    %v121 = vld [vmem:[%s117 + $0x18] sm:$0xff]
    %v122 = vld [vmem:[%s117 + $0x20] sm:$0xff]
    %v123 = vld [vmem:[%s117 + $0x28] sm:$0xff]
    %v124 = vld [vmem:[%s117 + $0x30] sm:$0xff]
    %v125 = vld [vmem:[%s117 + $0x38] sm:$0xff]
    %v126 = vld [vmem:[%s117 + $0x40] sm:$0xff]
    %v127 = vld [vmem:[%s117 + $0x48] sm:$0xff]
    %v128 = vld [vmem:[%s117 + $0x50] sm:$0xff]
    %v129 = vld [vmem:[%s117 + $0x58] sm:$0xff]
    %v130 = vld [vmem:[%s117 + $0x60] sm:$0xff]
    %v131 = vld [vmem:[%s117 + $0x68] sm:$0xff]
    %v132 = vld [vmem:[%s117 + $0x70] sm:$0xff]
    %v133 = vld [vmem:[%s117 + $0x78] sm:$0xff]
    %134 = vmatpush.msra.mxu0 %v133
    %135 = vmatpush.msra.mxu0 %v132
    %136 = vmatpush.msra.mxu0 %v131
    %137 = vmatpush.msra.mxu0 %v130
    %138 = vmatpush.msra.mxu0 %v129
    %139 = vmatpush.msra.mxu0 %v128
    %140 = vmatpush.msra.mxu0 %v127
    %141 = vmatpush.msra.mxu0 %v126
    %142 = vmatpush.msra.mxu0 %v125
    %143 = vmatpush.msra.mxu0 %v124
    %144 = vmatpush.msra.mxu0 %v123
    %145 = vmatpush.msra.mxu0 %v122
    %146 = vmatpush.msra.mxu0 %v121
    %147 = vmatpush.msra.mxu0 %v120
    %148 = vmatpush.msra.mxu0 %v119
    %149 = vmatpush.msra.mxu0 %v118
    %150 = vmatmul.f32.gmra.mxu0 %v25
    %v151 = vpop.f32.mrf.mxu0
    %v152 = vadd.f32 0.0, %v151
    %153 = vdwg.mxu0
    %154 = vmatpush.msra.mxu0 0.0
    %155 = vmatpush.msra.mxu0 0.0
    %156 = vmatpush.msra.mxu0 0.0
    %157 = vmatpush.msra.mxu0 0.0
    %158 = vmatpush.msra.mxu0 0.0
    %159 = vmatpush.msra.mxu0 0.0
    %160 = vmatpush.msra.mxu0 0.0
    %161 = vmatpush.msra.mxu0 0.0
    %162 = vmatpush.msra.mxu0 0.0
    %163 = vmatpush.msra.mxu0 0.0
    %164 = vmatpush.msra.mxu0 0.0
    %165 = vmatpush.msra.mxu0 0.0
    %166 = vmatpush.msra.mxu0 %v116
    %167 = vmatpush.msra.mxu0 %v115
    %168 = vmatpush.msra.mxu0 %v114
    %169 = vmatpush.msra.mxu0 %v113
    %170 = vmatmul.f32.gmra.mxu0 %v69
    %v171 = vpop.f32.mrf.mxu0
    %v172 = vadd.f32 %v152, %v171
    %173 = vdwg.mxu0
    %v174 = vperm.slane %v26, 1
    %v175 = vadd.f32 %v172, %v174
    %v176 = vxor.u32 %v175, 2147483648
    %v177 = vmul.f32 %v176, 1.442695
    %v178 = vpow.pop %v177
    %v179 = vadd.f32 %v178, 1.0
    %v180 = vrcp.pop %v179
    %v181 = vmul.f32 %v179, %v180
    %v182 = vsub.f32 1.0, %v181
    %v183 = vmul.f32 %v180, %v182
    %v184 = vadd.f32 %v180, %v183
    %vm185 = vweird.f32 %v179
    %vm186 = vweird.f32 %v180
    %vm187 = vmor %vm185, %vm186
    %v188 = vsel %vm187, %v180, %v184
    %v189 = vand.u32 2147483647, %v179
    %vm190 = vcmp.eq.f32.partialorder %v189, 8.507059e+37
    %v191 = vand.u32 %v179, 2147483648
    %v192 = vor.u32 1.1754944e-38, %v191
    %v193 = vsel %vm190, %v192, %v188
    %v194 = vmul.f32 1.0, %v193
    %v195 = vadd.f32 %v111, %v194
    %s196 = scalar_lea.vmem %s2, 64
    %v197 = vld [vmem:[%s196] sm:$0xff]
    %v198 = vld [vmem:[%s196 + $0x8] sm:$0xff]
    %v199 = vld [vmem:[%s196 + $0x10] sm:$0xff]
    %v200 = vld [vmem:[%s196 + $0x18] sm:$0xff]
    %s201 = scalar_lea.vmem %s3, 256
    %v202 = vld [vmem:[%s201] sm:$0xff]
    %v203 = vld [vmem:[%s201 + $0x8] sm:$0xff]
    %v204 = vld [vmem:[%s201 + $0x10] sm:$0xff]
    %v205 = vld [vmem:[%s201 + $0x18] sm:$0xff]
    %v206 = vld [vmem:[%s201 + $0x20] sm:$0xff]
    %v207 = vld [vmem:[%s201 + $0x28] sm:$0xff]
    %v208 = vld [vmem:[%s201 + $0x30] sm:$0xff]
    %v209 = vld [vmem:[%s201 + $0x38] sm:$0xff]
    %v210 = vld [vmem:[%s201 + $0x40] sm:$0xff]
    %v211 = vld [vmem:[%s201 + $0x48] sm:$0xff]
    %v212 = vld [vmem:[%s201 + $0x50] sm:$0xff]
    %v213 = vld [vmem:[%s201 + $0x58] sm:$0xff]
    %v214 = vld [vmem:[%s201 + $0x60] sm:$0xff]
    %v215 = vld [vmem:[%s201 + $0x68] sm:$0xff]
    %v216 = vld [vmem:[%s201 + $0x70] sm:$0xff]
    %v217 = vld [vmem:[%s201 + $0x78] sm:$0xff]
    %218 = vmatpush.msra.mxu0 %v217
    %219 = vmatpush.msra.mxu0 %v216
    %220 = vmatpush.msra.mxu0 %v215
    %221 = vmatpush.msra.mxu0 %v214
    %222 = vmatpush.msra.mxu0 %v213
    %223 = vmatpush.msra.mxu0 %v212
    %224 = vmatpush.msra.mxu0 %v211
    %225 = vmatpush.msra.mxu0 %v210
    %226 = vmatpush.msra.mxu0 %v209
    %227 = vmatpush.msra.mxu0 %v208
    %228 = vmatpush.msra.mxu0 %v207
    %229 = vmatpush.msra.mxu0 %v206
    %230 = vmatpush.msra.mxu0 %v205
    %231 = vmatpush.msra.mxu0 %v204
    %232 = vmatpush.msra.mxu0 %v203
    %233 = vmatpush.msra.mxu0 %v202
    %234 = vmatmul.f32.gmra.mxu0 %v25
    %v235 = vpop.f32.mrf.mxu0
    %v236 = vadd.f32 0.0, %v235
    %237 = vdwg.mxu0
    %238 = vmatpush.msra.mxu0 0.0
    %239 = vmatpush.msra.mxu0 0.0
    %240 = vmatpush.msra.mxu0 0.0
    %241 = vmatpush.msra.mxu0 0.0
    %242 = vmatpush.msra.mxu0 0.0
    %243 = vmatpush.msra.mxu0 0.0
    %244 = vmatpush.msra.mxu0 0.0
    %245 = vmatpush.msra.mxu0 0.0
    %246 = vmatpush.msra.mxu0 0.0
    %247 = vmatpush.msra.mxu0 0.0
    %248 = vmatpush.msra.mxu0 0.0
    %249 = vmatpush.msra.mxu0 0.0
    %250 = vmatpush.msra.mxu0 %v200
    %251 = vmatpush.msra.mxu0 %v199
    %252 = vmatpush.msra.mxu0 %v198
    %253 = vmatpush.msra.mxu0 %v197
    %254 = vmatmul.f32.gmra.mxu0 %v69
    %v255 = vpop.f32.mrf.mxu0
    %v256 = vadd.f32 %v236, %v255
    %257 = vdwg.mxu0
    %v258 = vperm.slane %v26, 2
    %v259 = vadd.f32 %v256, %v258
    %v260 = vtanh.pop %v259
    %v261 = vmul.f32 %v195, %v260
    %262 = vst [vmem:[#allocation4] sm:$0xff] %v261
    %s263 = scalar_lea.vmem %s2, 96
    %v264 = vld [vmem:[%s263] sm:$0xff]
    %v265 = vld [vmem:[%s263 + $0x8] sm:$0xff]
    %v266 = vld [vmem:[%s263 + $0x10] sm:$0xff]
    %v267 = vld [vmem:[%s263 + $0x18] sm:$0xff]
    %s268 = scalar_lea.vmem %s3, 384
    %v269 = vld [vmem:[%s268] sm:$0xff]
    %v270 = vld [vmem:[%s268 + $0x8] sm:$0xff]
    %v271 = vld [vmem:[%s268 + $0x10] sm:$0xff]
    %v272 = vld [vmem:[%s268 + $0x18] sm:$0xff]
    %v273 = vld [vmem:[%s268 + $0x20] sm:$0xff]
    %v274 = vld [vmem:[%s268 + $0x28] sm:$0xff]
    %v275 = vld [vmem:[%s268 + $0x30] sm:$0xff]
    %v276 = vld [vmem:[%s268 + $0x38] sm:$0xff]
    %v277 = vld [vmem:[%s268 + $0x40] sm:$0xff]
    %v278 = vld [vmem:[%s268 + $0x48] sm:$0xff]
    %v279 = vld [vmem:[%s268 + $0x50] sm:$0xff]
    %v280 = vld [vmem:[%s268 + $0x58] sm:$0xff]
    %v281 = vld [vmem:[%s268 + $0x60] sm:$0xff]
    %v282 = vld [vmem:[%s268 + $0x68] sm:$0xff]
    %v283 = vld [vmem:[%s268 + $0x70] sm:$0xff]
    %v284 = vld [vmem:[%s268 + $0x78] sm:$0xff]
    %285 = vmatpush.msra.mxu0 %v284
    %286 = vmatpush.msra.mxu0 %v283
    %287 = vmatpush.msra.mxu0 %v282
    %288 = vmatpush.msra.mxu0 %v281
    %289 = vmatpush.msra.mxu0 %v280
    %290 = vmatpush.msra.mxu0 %v279
    %291 = vmatpush.msra.mxu0 %v278
    %292 = vmatpush.msra.mxu0 %v277
    %293 = vmatpush.msra.mxu0 %v276
    %294 = vmatpush.msra.mxu0 %v275
    %295 = vmatpush.msra.mxu0 %v274
    %296 = vmatpush.msra.mxu0 %v273
    %297 = vmatpush.msra.mxu0 %v272
    %298 = vmatpush.msra.mxu0 %v271
    %299 = vmatpush.msra.mxu0 %v270
    %300 = vmatpush.msra.mxu0 %v269
    %301 = vmatmul.f32.gmra.mxu0 %v25
    %v302 = vpop.f32.mrf.mxu0
    %v303 = vadd.f32 0.0, %v302
    %304 = vdwg.mxu0
    %305 = vmatpush.msra.mxu0 0.0
    %306 = vmatpush.msra.mxu0 0.0
    %307 = vmatpush.msra.mxu0 0.0
    %308 = vmatpush.msra.mxu0 0.0
    %309 = vmatpush.msra.mxu0 0.0
    %310 = vmatpush.msra.mxu0 0.0
    %311 = vmatpush.msra.mxu0 0.0
    %312 = vmatpush.msra.mxu0 0.0
    %313 = vmatpush.msra.mxu0 0.0
    %314 = vmatpush.msra.mxu0 0.0
    %315 = vmatpush.msra.mxu0 0.0
    %316 = vmatpush.msra.mxu0 0.0
    %317 = vmatpush.msra.mxu0 %v267
    %318 = vmatpush.msra.mxu0 %v266
    %319 = vmatpush.msra.mxu0 %v265
    %320 = vmatpush.msra.mxu0 %v264
    %321 = vmatmul.f32.gmra.mxu0 %v69
    %v322 = vpop.f32.mrf.mxu0
    %v323 = vadd.f32 %v303, %v322
    %324 = vdwg.mxu0
    %v325 = vperm.slane %v26, 3
    %v326 = vadd.f32 %v323, %v325
    %v327 = vxor.u32 %v326, 2147483648
    %v328 = vmul.f32 %v327, 1.442695
    %v329 = vpow.pop %v328
    %v330 = vadd.f32 %v329, 1.0
    %v331 = vrcp.pop %v330
    %v332 = vmul.f32 %v330, %v331
    %v333 = vsub.f32 1.0, %v332
    %v334 = vmul.f32 %v331, %v333
    %v335 = vadd.f32 %v331, %v334
    %vm336 = vweird.f32 %v330
    %vm337 = vweird.f32 %v331
    %vm338 = vmor %vm336, %vm337
    %v339 = vsel %vm338, %v331, %v335
    %v340 = vand.u32 2147483647, %v330
    %vm341 = vcmp.eq.f32.partialorder %v340, 8.507059e+37
    %v342 = vand.u32 %v330, 2147483648
    %v343 = vor.u32 1.1754944e-38, %v342
    %v344 = vsel %vm341, %v343, %v339
    %v345 = vmul.f32 1.0, %v344
    %v346 = vtanh.pop %v261
    %v347 = vmul.f32 %v345, %v346
    %348 = vst [vmem:[#allocation2] sm:$0xff] %v347
    // Predicated region
    $region22: #{my_lstm_cell.1} parent=1 // pred_check
      _
    $region23: #{my_lstm_cell.1} parent=1 // pred_check_branch
      %350 = sbr.rel (0) target = $region25
    $region24: #{my_lstm_cell.1} parent=1 // pred_region
      %352 = vsyncadd [#allocation3], 0
      %s354 = sshll.u32 [#allocation2], 4
      %s355 = int_to_ptr.vmem [resolvable:$true] %s354
      %s356 = sshll.u32 %s5, 4
      %s357 = int_to_ptr.hbm [resolvable:$true] %s356
      %359 = dma.vmem_to_hbm [thread:$0]  %s355, 128, %s357, [#allocation3]
    $region25: #{my_lstm_cell.1} parent=1 // pred_fallthru
      _
    // Predicated region
    $region26: #{my_lstm_cell.1} parent=1 // pred_check
      _
    $region27: #{my_lstm_cell.1} parent=1 // pred_check_branch
      %361 = sbr.rel (0) target = $region29
    $region28: #{my_lstm_cell.1} parent=1 // pred_region
      %363 = vsyncadd [#allocation5], 0
      %s365 = sshll.u32 [#allocation4], 4
      %s366 = int_to_ptr.vmem [resolvable:$true] %s365
      %s367 = sshll.u32 %s6, 4
      %s368 = int_to_ptr.hbm [resolvable:$true] %s367
      %370 = dma.vmem_to_hbm [thread:$0]  %s366, 128, %s368, [#allocation5]
    $region29: #{my_lstm_cell.1} parent=1 // pred_fallthru
      _
    // Predicated region
    $region30: #{my_lstm_cell.1} parent=1 // pred_check
      _
    $region31: #{my_lstm_cell.1} parent=1 // pred_check_branch
      %372 = sbr.rel (0) target = $region33
    $region32: #{my_lstm_cell.1} parent=1 // pred_region
      %374 = dma.done [#allocation3], 128
    $region33: #{my_lstm_cell.1} parent=1 // pred_fallthru
      _
    // Predicated region
    $region34: #{my_lstm_cell.1} parent=1 // pred_check
      _
    $region35: #{my_lstm_cell.1} parent=1 // pred_check_branch
      %376 = sbr.rel (0) target = $region37
    $region36: #{my_lstm_cell.1} parent=1 // pred_region
      %378 = dma.done [#allocation5], 128
    $region37: #{my_lstm_cell.1} parent=1 // pred_fallthru
      _
    %379 = vsyncpa [#allocation3], 1
    %380 = vsyncpa [#allocation5], 1

</llo_original>
